<compile_context>
chip_gen: v7x
topology: tpu7x:2x2x1
jax: 0.10.0
libtpu: 0.0.40
codegen_flags: <defaults>
</compile_context>

<pallas_src>
import functools
import math

import jax
import jax.numpy as jnp
from jax.experimental import pallas as pl
from jax.experimental.pallas import tpu as pltpu


def _round_up(x, m):
    return ((x + m - 1) // m) * m


def _sublane_multiple(dtype):
    # f32 -> 8, bf16 -> 16, int8/fp8 -> 32 (sub-32-bit dtypes pack along sublanes)
    return max(8, 32 // jnp.dtype(dtype).itemsize)


def _vmem_limit_bytes():
    try:
        cap = pltpu.get_tpu_info().vmem_capacity_bytes
    except Exception:
        return 32 * 1024 * 1024
    # 64 MiB on v5e/v6e (128 MiB physical), ~48 MiB on v7x (64 MiB physical).
    return int(min(64 * 1024 * 1024, max(32 * 1024 * 1024, (cap * 3) // 4)))


def _myloss_kernel(x_ref, y_ref, psum_ref, *, n_valid, tn, n_inner, n_full,
                   needs_mask):
    """Squared-difference partial sums, accumulated across the column axis.

    x_ref:    (tm, tn) tile of the input (boundary tiles may hold garbage in
              out-of-bounds rows/columns; columns are masked here, rows are
              discarded in the wrapper).
    y_ref:    (tm, tn) tile of the repeating y_hat pattern (same block for all
              column blocks in the lcm path).
    psum_ref: (tm, 128) f32 lane-dense partial sums, resident across the inner
              (reduction) grid axis.
    """
    jo = pl.program_id(1)
    ji = pl.program_id(2)
    jb = jo * n_inner + ji            # global column-block index

    @pl.when(ji == 0)
    def _():
        psum_ref[...] = jnp.zeros_like(psum_ref)

    # In-kernel upcast (hidden under the DMA); pure VPU elementwise work.
    x = x_ref[...].astype(jnp.float32)
    y = y_ref[...].astype(jnp.float32)
    d = x - y

    def _accumulate(dd):
        # Lane-dense accumulation: fold 128-lane groups into a (tm, 128) psum
        # with plain VPU adds (no per-tile XLU cross-lane reduce, no masked
        # single-lane stores).  Final cross-lane sum happens in the wrapper.
        acc = psum_ref[...]
        for g in range(tn // 128):
            dg = dd[:, g * 128:(g + 1) * 128]
            acc = acc + dg * dg
        psum_ref[...] = acc

    if not needs_mask:
        # N is a tile multiple and there are no empty blocks: no mask anywhere.
        _accumulate(d)
    else:
        # Interior column blocks skip the mask entirely (keeps the kernel
        # HBM-bound instead of VALU-bound on v7x's 3.2 TB/s HBM).
        @pl.when(jb < n_full)
        def _():
            _accumulate(d)

        # Partial (and fully-empty) column blocks: zero out columns >= N.
        @pl.when(jb >= n_full)
        def _():
            col = jb * tn + jax.lax.broadcasted_iota(jnp.int32, d.shape, 1)
            _accumulate(jnp.where(col < n_valid, d, 0.0))


def my_loss(inp, y_hat, *, tm_target=256, tn_target=2048, lcm_cap=32768,
            tile_bytes_budget=4 << 20):
    """JAX/Pallas equivalent of MyLoss.forward(input, y_hat)."""
    B = inp.shape[0]
    N = inp.shape[-1]
    C = y_hat.shape[1]

    # (B, 1, N) -> (B, N); dtype preserved, upcast happens inside the kernel.
    x = inp.reshape(B, N)

    sub = max(_sublane_multiple(x.dtype), _sublane_multiple(y_hat.dtype))
    lcm = (128 * C) // math.gcd(128, C)        # lane-aligned y period
    n128 = _round_up(N, 128)

    # ---- column tile ---------------------------------------------------------
    fallback_full_y = False
    if n128 <= max(tn_target, 128):
        # Whole row fits in a single column block: the pattern tile only has to
        # cover columns [0, tn), so no period constraint is needed.
        tn = n128
        pattern_cols = tn
    elif lcm <= lcm_cap:
        # tn is a multiple of both 128 (lanes) and C (the y period): a single
        # (tm, tn) pattern tile is exact for EVERY column block -> y is never
        # materialized at full (B, N) and HBM read traffic ~halves.
        tn = lcm * pl.cdiv(tn_target, lcm)     # never below tn_target
        pattern_cols = tn
    else:
        # TODO(synk): lcm(128, class_num) too large for one reusable lane tile;
        # fall back to a full-width replicated y (~2x HBM read traffic).
        fallback_full_y = True
        tn = _round_up(tn_target, 128)
        pattern_cols = None

    # ---- row tile: sublane aligned, capped so double-buffered x + y tiles fit
    # the scoped-VMEM limit on every generation (incl. v7x's 64 MiB). ----------
    row_cap = max(sub, (tile_bytes_budget // (tn * 4)) // sub * sub)
    tm = max(sub, min(tm_target, _round_up(B, sub), row_cap))

    grid_m = pl.cdiv(B, tm)
    grid_n = pl.cdiv(N, tn)
    m_rows = grid_m * tm

    # v7x has 2 TensorCores: when there is only one row block, split the column
    # reduction into an outer "parallel" axis so both cores get work (harmless
    # on single-TC v5e/v6e).
    n_outer = 2 if (grid_m == 1 and grid_n >= 2) else 1
    n_inner = pl.cdiv(grid_n, n_outer)
    has_empty = (n_outer * n_inner) != grid_n
    needs_mask = (N % tn != 0) or has_empty
    n_full = N // tn

    # Clamp the column-block index so trailing "empty" blocks (from the n_outer
    # split) re-read an in-bounds block; their contribution is masked to zero.
    x_index_map = lambda i, jo, ji: (i, jnp.minimum(jo * n_inner + ji, grid_n - 1))

    # ---- replicated-y pattern -------------------------------------------------
    if fallback_full_y:
        reps = pl.cdiv(N, C)
        y_arr = jnp.tile(y_hat, (1, reps))[:, :N]          # (B, N) fallback
        y_index_map = x_index_map
    else:
        reps = pl.cdiv(pattern_cols, C)
        y_arr = jnp.tile(y_hat, (1, reps))[:, :pattern_cols]  # (B, tn) -- tiny
        y_index_map = lambda i, jo, ji: (i, 0)             # reused for every j
    if m_rows != B:
        # Tiny row pad so every y DMA is fully in-bounds.  x itself is NOT
        # padded: garbage only lands in partial-sum rows >= B, sliced off below.
        y_arr = jnp.pad(y_arr, ((0, m_rows - B), (0, 0)))

    kernel = functools.partial(
        _myloss_kernel, n_valid=N, tn=tn, n_inner=n_inner, n_full=n_full,
        needs_mask=needs_mask)

    partial_sums = pl.pallas_call(
        kernel,
        out_shape=jax.ShapeDtypeStruct((m_rows, n_outer * 128), jnp.float32),
        grid=(grid_m, n_outer, n_inner),
        in_specs=[
            pl.BlockSpec((tm, tn), x_index_map),            # streaming x tiles
            pl.BlockSpec((tm, tn), y_index_map),            # reusable y pattern
        ],
        out_specs=pl.BlockSpec((tm, 128), lambda i, jo, ji: (i, jo)),
        compiler_params=pltpu.CompilerParams(
            dimension_semantics=("parallel", "parallel", "arbitrary"),
            vmem_limit_bytes=_vmem_limit_bytes(),
        ),
    )(x, y_arr)

    # Drop partial-sum rows that came from out-of-bounds row-block padding,
    # then finish the (tiny) reduction, mean and log in plain XLA.
    total = jnp.sum(partial_sums[:B])
    return jnp.log(total / jnp.float32(B * N))


def _reference(inp, y_hat):
    """Pure-JAX mirror of the PyTorch forward."""
    B, _, N = inp.shape
    C = y_hat.shape[1]
    x = inp.reshape(B, N).astype(jnp.float32)
    reps = -(-N // C)
    y = jnp.tile(y_hat.astype(jnp.float32), (1, reps))[:, :N]
    return jnp.log(jnp.mean((x - y) ** 2))


if __name__ == "__main__":
    key = jax.random.PRNGKey(0)
    k1, k2, k3, k4, k5, k6 = jax.random.split(key, 6)

    # Case 1: tiny shapes consistent with the module: input (B, 1, N), y_hat (B, C).
    # Exercises the single-column-block path + column mask + row slicing.
    B, N, CLASS_NUM = 4, 32, 10
    inp = jax.random.normal(k1, (B, 1, N), dtype=jnp.float32)
    y_hat = jax.random.normal(k2, (B, CLASS_NUM), dtype=jnp.float32)
    loss = my_loss(inp, y_hat)
    jax.block_until_ready(loss)
    ref = _reference(inp, y_hat)
    assert jnp.allclose(loss, ref, rtol=1e-5, atol=1e-5), (loss, ref)

    # Case 2: multiple column blocks (lcm path), ragged last block, n_outer split
    # (grid_m == 1), and a clamped empty trailing block.
    B2, N2, C2 = 16, 6000, 10
    inp2 = jax.random.normal(k3, (B2, 1, N2), dtype=jnp.float32)
    y_hat2 = jax.random.normal(k4, (B2, C2), dtype=jnp.float32)
    loss2 = my_loss(inp2, y_hat2)
    jax.block_until_ready(loss2)
    ref2 = _reference(inp2, y_hat2)
    assert jnp.allclose(loss2, ref2, rtol=1e-5, atol=1e-5), (loss2, ref2)

    # Case 3: exactly one full tile (N a multiple of tn) -> static no-mask path.
    B3, N3, C3 = 8, 2560, 10
    inp3 = jax.random.normal(k5, (B3, 1, N3), dtype=jnp.float32)
    y_hat3 = jax.random.normal(k6, (B3, C3), dtype=jnp.float32)
    loss3 = my_loss(inp3, y_hat3)
    jax.block_until_ready(loss3)
    ref3 = _reference(inp3, y_hat3)
    assert jnp.allclose(loss3, ref3, rtol=1e-5, atol=1e-5), (loss3, ref3)

    print("KERNEL_OK")
</pallas_src>

<mosaic_0001>
module attributes {stable_mosaic.version = 11 : i64} {
  func.func @_myloss_kernel(%arg0: i32, %arg1: i32, %arg2: i32, %arg3: memref<8x128xf32, #tpu.memory_space<vmem>>, %arg4: memref<8x128xf32, #tpu.memory_space<vmem>>, %arg5: memref<8x128xf32, #tpu.memory_space<vmem>>) attributes {dimension_semantics = [#tpu.dimension_semantics<parallel>, #tpu.dimension_semantics<parallel>, #tpu.dimension_semantics<arbitrary>], iteration_bounds = array<i64: 1, 1, 1>, scalar_prefetch = 0 : i64, scratch_operands = 0 : i64, tpu.core_type = #tpu.core_type<tc>, window_params = [{transform_indices = @transform_0, window_bounds = array<i64: 8, 128>}, {transform_indices = @transform_1, window_bounds = array<i64: 8, 128>}, {transform_indices = @transform_2, window_bounds = array<i64: 8, 128>}]} {
    %c1_i32 = arith.constant 1 : i32
    %0 = arith.muli %arg1, %c1_i32 : i32
    %1 = arith.addi %0, %arg2 : i32
    %c0_i32 = arith.constant 0 : i32
    %2 = arith.cmpi eq, %arg2, %c0_i32 : i32
    %3 = arith.extui %2 : i1 to i32
    %c0_i32_0 = arith.constant 0 : i32
    %4 = arith.cmpi ne, %3, %c0_i32_0 : i32
    scf.if %4 {
      %cst = arith.constant 0.000000e+00 : f32
      %14 = vector.broadcast %cst : f32 to vector<8x128xf32>
      %c0_8 = arith.constant 0 : index
      %c0_9 = arith.constant 0 : index
      %15 = vector.load %arg5[%c0_8, %c0_9] : memref<8x128xf32, #tpu.memory_space<vmem>>, vector<8x128xf32>
      tpu.vector_store %arg5[%c0_8, %c0_9], %14 {strides = array<i32>} : memref<8x128xf32, #tpu.memory_space<vmem>>, vector<8x128xf32>,
    } else {
    }
    %c0 = arith.constant 0 : index
    %c0_1 = arith.constant 0 : index
    %5 = vector.load %arg3[%c0, %c0_1] : memref<8x128xf32, #tpu.memory_space<vmem>>, vector<8x128xf32>
    %c0_2 = arith.constant 0 : index
    %c0_3 = arith.constant 0 : index
    %6 = vector.load %arg4[%c0_2, %c0_3] : memref<8x128xf32, #tpu.memory_space<vmem>>, vector<8x128xf32>
    %7 = arith.subf %5, %6 : vector<8x128xf32>
    %c0_i32_4 = arith.constant 0 : i32
    %8 = arith.cmpi slt, %1, %c0_i32_4 : i32
    %9 = arith.extui %8 : i1 to i32
    %c0_i32_5 = arith.constant 0 : i32
    %10 = arith.cmpi ne, %9, %c0_i32_5 : i32
    scf.if %10 {
      %c0_8 = arith.constant 0 : index
      %c0_9 = arith.constant 0 : index
      %14 = vector.load %arg5[%c0_8, %c0_9] : memref<8x128xf32, #tpu.memory_space<vmem>>, vector<8x128xf32>
      %15 = arith.mulf %7, %7 : vector<8x128xf32>
      %16 = arith.addf %14, %15 : vector<8x128xf32>
      %c0_10 = arith.constant 0 : index
      %c0_11 = arith.constant 0 : index
      %17 = vector.load %arg5[%c0_10, %c0_11] : memref<8x128xf32, #tpu.memory_space<vmem>>, vector<8x128xf32>
      tpu.vector_store %arg5[%c0_10, %c0_11], %16 {strides = array<i32>} : memref<8x128xf32, #tpu.memory_space<vmem>>, vector<8x128xf32>,
    } else {
    }
    %c0_i32_6 = arith.constant 0 : i32
    %11 = arith.cmpi sge, %1, %c0_i32_6 : i32
    %12 = arith.extui %11 : i1 to i32
    %c0_i32_7 = arith.constant 0 : i32
    %13 = arith.cmpi ne, %12, %c0_i32_7 : i32
    scf.if %13 {
      %c128_i32 = arith.constant 128 : i32
      %14 = arith.muli %1, %c128_i32 : i32
      %15 = tpu.iota {dimensions = array<i32: 1>} : vector<8x128xi32>
      %16 = vector.broadcast %14 : i32 to vector<8x128xi32>
      %17 = arith.addi %16, %15 : vector<8x128xi32>
      %c32_i32 = arith.constant 32 : i32
      %18 = vector.broadcast %c32_i32 : i32 to vector<8x128xi32>
      %19 = arith.cmpi slt, %17, %18 : vector<8x128xi32>
      %cst = arith.constant 0.000000e+00 : f32
      %20 = vector.broadcast %cst : f32 to vector<8x128xf32>
      %21 = arith.select %19, %7, %20 : vector<8x128xi1>, vector<8x128xf32>
      %c0_8 = arith.constant 0 : index
      %c0_9 = arith.constant 0 : index
      %22 = vector.load %arg5[%c0_8, %c0_9] : memref<8x128xf32, #tpu.memory_space<vmem>>, vector<8x128xf32>
      %23 = arith.mulf %21, %21 : vector<8x128xf32>
      %24 = arith.addf %22, %23 : vector<8x128xf32>
      %c0_10 = arith.constant 0 : index
      %c0_11 = arith.constant 0 : index
      %25 = vector.load %arg5[%c0_10, %c0_11] : memref<8x128xf32, #tpu.memory_space<vmem>>, vector<8x128xf32>
      tpu.vector_store %arg5[%c0_10, %c0_11], %24 {strides = array<i32>} : memref<8x128xf32, #tpu.memory_space<vmem>>, vector<8x128xf32>,
    } else {
    }
    return
  }
  func.func @transform_0(%arg0: i32, %arg1: i32, %arg2: i32) -> (i32, i32) {
    %c1_i32 = arith.constant 1 : i32
    %0 = arith.muli %arg1, %c1_i32 : i32
    %1 = arith.addi %0, %arg2 : i32
    %c0_i32 = arith.constant 0 : i32
    %2 = arith.minsi %1, %c0_i32 : i32
    %c0_i32_0 = arith.constant 0 : i32
    return %arg0, %2 : i32, i32
  }
  func.func @transform_1(%arg0: i32, %arg1: i32, %arg2: i32) -> (i32, i32) {
    %c0_i32 = arith.constant 0 : i32
    %c0_i32_0 = arith.constant 0 : i32
    return %arg0, %c0_i32 : i32, i32
  }
  func.func @transform_2(%arg0: i32, %arg1: i32, %arg2: i32) -> (i32, i32) {
    %c0_i32 = arith.constant 0 : i32
    return %arg0, %arg1 : i32, i32
  }
}

</mosaic_0001>

<llo_original>
// kernel: tpu_custom_call.1
$region0: #{tpu_custom_call.1}
  #allocation0 [shape = 'u32[]', space=smem, size = 0x4, offset = 0x4, fixed_abs, tag = 'smem constant byte address 0x4 - core index']
  #allocation1 [shape = 'u32[144,128]{1,0:T(1,128)}', space=vmem, size = 0x12000, scoped, tag = 'internal scratch']
  %s0 = inlined_call_operand.hbm [shape: f32[4,32], index: 0, kind: input, shape index: {}]
  %s1 = inlined_call_operand.hbm [shape: f32[8,128], index: 1, kind: input, shape index: {}]
  %s2 = inlined_call_operand.hbm [shape: f32[8,128], index: 2, kind: output, shape index: {}]
  %s3 = sld [smem:[#allocation0]]
  $region38: #{tpu_custom_call.1} parent=0
    _
  %s5 = ssub.s32 1, %s3
  %s6 = scalar_select 0, %s5, %s3
  $region1: #{tpu_custom_call.1} parent=0
    #allocation2 [shape = 'u8[4096]{0}', space=vmem, size = 0x1000, scoped, tag = 'input window, operand 0, single buffered']
    #allocation3 [shape = 's32[1]{0}', space=sflag, size = 0x4, scoped, tag = 'scoped memory for tpu_custom_call.1']
    #allocation4 [shape = 's32[1]{0}', space=sflag, size = 0x4, scoped, tag = 'scoped memory for tpu_custom_call.1']
    #allocation5 [shape = 'u8[4096]{0}', space=vmem, size = 0x1000, scoped, tag = 'input window, operand 1, single buffered']
    #allocation6 [shape = 's32[1]{0}', space=sflag, size = 0x4, scoped, tag = 'scoped memory for tpu_custom_call.1']
    #allocation7 [shape = 'u8[4096]{0}', space=vmem, size = 0x1000, scoped, tag = 'output window, operand 0, single buffered']
    %7 = vsyncpa [#allocation3], 0
    %8 = vsyncpa [#allocation6], 0
    %9 = vsyncpa [#allocation4], 0
    // Predicated region
    $region2: #{tpu_custom_call.1} parent=1 // pred_check
      _
    $region3: #{tpu_custom_call.1} parent=1 // pred_check_branch
      %11 = sbr.rel (0) target = $region5
    $region4: #{tpu_custom_call.1} parent=1 // pred_region
      %s12 = sadd.s32 0, 0
      %p13 = scmp.lt.s32.totalorder %s12, 0
      %s14 = scalar_select %p13, %s12, 0
      %s16 = ssub.s32 128, 64
      %17 = vsyncadd [#allocation3], %s16
      %s18 = smul.addr %s14, 64
      %s19 = scalar_lea.hbm %s0, %s18
      %s20 = sshll.u32 [#allocation2], 4
      %s21 = int_to_ptr.vmem [resolvable:$true] %s20
      %26 = dma.hbm_to_vmem [thread:$0]  %s19, 64, %s21, [#allocation3], 64, 64, 4
    $region5: #{tpu_custom_call.1} parent=1 // pred_fallthru
      _
    // Predicated region
    $region6: #{tpu_custom_call.1} parent=1 // pred_check
      _
    $region7: #{tpu_custom_call.1} parent=1 // pred_check_branch
      %28 = sbr.rel (0) target = $region9
    $region8: #{tpu_custom_call.1} parent=1 // pred_region
      %s30 = ssub.s32 128, 128
      %31 = vsyncadd [#allocation6], %s30
      %s33 = sshll.u32 [#allocation5], 4
      %s34 = int_to_ptr.vmem [resolvable:$true] %s33
      %36 = dma.hbm_to_vmem [thread:$0]  %s1, 128, %s34, [#allocation6]
    $region9: #{tpu_custom_call.1} parent=1 // pred_fallthru
      _
    // Predicated region
    $region10: #{tpu_custom_call.1} parent=1 // pred_check
      _
    $region11: #{tpu_custom_call.1} parent=1 // pred_check_branch
      %38 = sbr.rel (0) target = $region13
    $region12: #{tpu_custom_call.1} parent=1 // pred_region
      %39 = dma.done [#allocation3], 128
    $region13: #{tpu_custom_call.1} parent=1 // pred_fallthru
      _
    // Predicated region
    $region14: #{tpu_custom_call.1} parent=1 // pred_check
      _
    $region15: #{tpu_custom_call.1} parent=1 // pred_check_branch
      %41 = sbr.rel (0) target = $region17
    $region16: #{tpu_custom_call.1} parent=1 // pred_region
      %42 = dma.done [#allocation6], 128
    $region17: #{tpu_custom_call.1} parent=1 // pred_fallthru
      _
    %s43 = sadd.s32 0, 0
    %p44 = scmp.lt.s32.totalorder %s43, 0
    %s45 = scalar_select %p44, %s43, 0
    %s46 = sadd.s32 0, 0
    %p47 = scmp.eq.s32.totalorder 0, 0
    // Predicated region
    $region18: #{tpu_custom_call.1} parent=1 // pred_check
      %p48 = pneg %p47
    $region19: #{tpu_custom_call.1} parent=1 // pred_check_branch
      %50 = sbr.rel (%p48) target = $region21
    $region20: #{tpu_custom_call.1} parent=1 // pred_region
      %51 = vst [vmem:[#allocation7] sm:$0xff] 0.0
    $region21: #{tpu_custom_call.1} parent=1 // pred_fallthru
      _
    %v52 = vld [vmem:[#allocation2] sm:$0xff]
    %v53 = vld [vmem:[#allocation5] sm:$0xff]
    %v54 = vsub.f32 %v52, %v53
    %p55 = scmp.lt.s32.totalorder %s46, 0
    // Predicated region
    $region22: #{tpu_custom_call.1} parent=1 // pred_check
      %p56 = pneg %p55
    $region23: #{tpu_custom_call.1} parent=1 // pred_check_branch
      %58 = sbr.rel (%p56) target = $region25
    $region24: #{tpu_custom_call.1} parent=1 // pred_region
      %v59 = vld [vmem:[#allocation7] sm:$0xff]
      %v60 = vmul.f32 %v54, %v54
      %v61 = vadd.f32 %v59, %v60
      %62 = vst [vmem:[#allocation7] sm:$0xff] %v61
    $region25: #{tpu_custom_call.1} parent=1 // pred_fallthru
      _
    %p63 = scmp.ge.s32.totalorder %s46, 0
    // Predicated region
    $region26: #{tpu_custom_call.1} parent=1 // pred_check
      %p64 = pneg %p63
    $region27: #{tpu_custom_call.1} parent=1 // pred_check_branch
      %66 = sbr.rel (%p64) target = $region29
    $region28: #{tpu_custom_call.1} parent=1 // pred_region
      %s67 = smul.u32 %s46, 128
      %v68 = vlaneseq
      %v69 = vand.u32 %v68, 127
      %v70 = vstv %s67
      %v71 = vadd.s32 %v70, %v69
      %vm72 = vcmp.lt.s32.totalorder %v71, 32
      %v73 = vsel %vm72, %v54, 0.0
      %v74 = vld [vmem:[#allocation7] sm:$0xff]
      %v75 = vmul.f32 %v73, %v73
      %v76 = vadd.f32 %v74, %v75
      %77 = vst [vmem:[#allocation7] sm:$0xff] %v76
    $region29: #{tpu_custom_call.1} parent=1 // pred_fallthru
      _
    // Predicated region
    $region30: #{tpu_custom_call.1} parent=1 // pred_check
      _
    $region31: #{tpu_custom_call.1} parent=1 // pred_check_branch
      %79 = sbr.rel (0) target = $region33
    $region32: #{tpu_custom_call.1} parent=1 // pred_region
      %s81 = ssub.s32 128, 128
      %82 = vsyncadd [#allocation4], %s81
      %s84 = sshll.u32 [#allocation7], 4
      %s85 = int_to_ptr.vmem [resolvable:$true] %s84
      %87 = dma.vmem_to_hbm [thread:$0]  %s85, 128, %s2, [#allocation4]
    $region33: #{tpu_custom_call.1} parent=1 // pred_fallthru
      _
    // Predicated region
    $region34: #{tpu_custom_call.1} parent=1 // pred_check
      _
    $region35: #{tpu_custom_call.1} parent=1 // pred_check_branch
      %89 = sbr.rel (0) target = $region37
    $region36: #{tpu_custom_call.1} parent=1 // pred_region
      %90 = dma.done [#allocation4], 128
    $region37: #{tpu_custom_call.1} parent=1 // pred_fallthru
      _
    %91 = vsyncpa [#allocation3], 1
    %92 = vsyncpa [#allocation6], 1
    %93 = vsyncpa [#allocation4], 1

</llo_original>
